<compile_context>
chip_gen: v7x
topology: tpu7x:2x2x1
jax: 0.10.0
libtpu: 0.0.40
codegen_flags: <defaults>
</compile_context>

<pallas_src>
import functools

import jax
import jax.numpy as jnp
from jax.experimental import pallas as pl
from jax.experimental.pallas import tpu as pltpu

BN_EPS = 1e-5


def residual_fused_kernel(x_ref, w_ref, p_ref, out_ref, *, n_rows, in_dim, out_dim):
    """Single-step fused forward: out = concat([relu(bn_train(x @ W)), x], 1)."""
    x = x_ref[...]

    # Linear.  Bias omitted: mean subtraction in training-mode BatchNorm
    # cancels it exactly, so the forward output is unchanged.
    h = jnp.dot(x, w_ref[...], preferred_element_type=jnp.float32)

    # BatchNorm1d, training mode: biased batch statistics over the batch dim,
    # always accumulated/normalized in f32.
    inv_n = 1.0 / n_rows
    mean = jnp.sum(h, axis=0, keepdims=True) * inv_n
    centered = h - mean
    var = jnp.sum(centered * centered, axis=0, keepdims=True) * inv_n
    inv_std = jax.lax.rsqrt(var + BN_EPS)

    gamma = p_ref[0:1, :].astype(jnp.float32)
    beta = p_ref[1:2, :].astype(jnp.float32)
    y = jnp.maximum(gamma * (centered * inv_std) + beta, 0.0)

    # Fused concat: two static stores into the (B, O + I) output.  With O a
    # multiple of 128 (true for CTGAN widths) both stores are lane-aligned.
    out_ref[:, :out_dim] = y.astype(out_ref.dtype)
    out_ref[:, out_dim:out_dim + in_dim] = x.astype(out_ref.dtype)


def pack_bn_params(gamma, beta):
    """Pack BatchNorm affine params into one (2, O) slab (do this ONCE at init)."""
    return jnp.stack([gamma, beta], axis=0)


def residual_forward_packed(x, w, params):
    """Pallas forward for CTGAN Residual with pre-packed (2, O) BN params.

    Returns concat([relu(batchnorm_train(x @ w)), x], axis=1), shape (B, O + I).
    The linear bias is intentionally absent: it cancels exactly under
    training-mode BatchNorm.
    """
    B, I = x.shape
    O = w.shape[1]
    assert params.shape == (2, O), params.shape

    kernel = functools.partial(
        residual_fused_kernel, n_rows=B, in_dim=I, out_dim=O
    )

    return pl.pallas_call(
        kernel,
        out_shape=jax.ShapeDtypeStruct((B, O + I), x.dtype),
        grid=(1,),
        in_specs=[
            pl.BlockSpec((B, I), lambda i: (0, 0)),   # x, fully resident
            pl.BlockSpec((I, O), lambda i: (0, 0)),   # W, fully resident
            pl.BlockSpec((2, O), lambda i: (0, 0)),   # packed gamma/beta
        ],
        out_specs=pl.BlockSpec((B, O + I), lambda i: (0, 0)),
        compiler_params=pltpu.CompilerParams(
            dimension_semantics=("arbitrary",),
        ),
    )(x, w, params)


def residual_forward(x, w, b, gamma, beta):
    """Convenience wrapper matching the torch module's parameter set.

    `b` is accepted for interface parity but unused (exact cancellation under
    training-mode BatchNorm).  Prefer packing gamma/beta once with
    `pack_bn_params` and calling `residual_forward_packed` in hot loops.
    """
    del b
    return residual_forward_packed(x, w, pack_bn_params(gamma, beta))


def reference_forward(x, w, b, gamma, beta):
    """Pure-JAX reference matching torch semantics (training-mode BatchNorm1d)."""
    h = x @ w + b
    mean = jnp.mean(h, axis=0, keepdims=True)
    var = jnp.mean((h - mean) ** 2, axis=0, keepdims=True)
    y = gamma * (h - mean) / jnp.sqrt(var + BN_EPS) + beta
    y = jnp.maximum(y, 0.0)
    return jnp.concatenate([y, x], axis=1)


if __name__ == "__main__":
    # First Residual block of the CTGAN generator: Residual(i=128, o=256).
    # NOTE: real CTGAN batches are ~500; the kernel is benchmarked there, the
    # small B=8 here is just a deterministic correctness demo.
    B, I, O = 8, 128, 256

    key = jax.random.PRNGKey(0)
    kx, kw, kb, kg, kbeta = jax.random.split(key, 5)

    x = jax.random.normal(kx, (B, I), dtype=jnp.float32)

    # Mimic torch Linear init: uniform(-1/sqrt(I), 1/sqrt(I)).
    bound = 1.0 / jnp.sqrt(jnp.float32(I))
    w = jax.random.uniform(kw, (I, O), minval=-bound, maxval=bound, dtype=jnp.float32)
    b = jax.random.uniform(kb, (O,), minval=-bound, maxval=bound, dtype=jnp.float32)
    # BatchNorm1d affine params (default ones/zeros, perturbed to exercise the path).
    gamma = 1.0 + 0.1 * jax.random.normal(kg, (O,), dtype=jnp.float32)
    beta = 0.1 * jax.random.normal(kbeta, (O,), dtype=jnp.float32)

    # Pack the BN params once (hoisted out of the per-forward path).
    params = pack_bn_params(gamma, beta)

    out = jax.block_until_ready(residual_forward_packed(x, w, params))
    ref = reference_forward(x, w, b, gamma, beta)

    assert out.shape == (B, O + I), out.shape
    max_err = float(jnp.max(jnp.abs(out - ref)))
    assert jnp.allclose(out, ref, atol=1e-4, rtol=1e-4), max_err

    print("KERNEL_OK")
</pallas_src>

<mosaic_0001>
module attributes {stable_mosaic.version = 11 : i64} {
  func.func @residual_fused_kernel(%arg0: i32, %arg1: memref<8x128xf32, #tpu.memory_space<vmem>>, %arg2: memref<128x256xf32, #tpu.memory_space<vmem>>, %arg3: memref<2x256xf32, #tpu.memory_space<vmem>>, %arg4: memref<8x384xf32, #tpu.memory_space<vmem>>) attributes {dimension_semantics = [#tpu.dimension_semantics<arbitrary>], iteration_bounds = array<i64: 1>, scalar_prefetch = 0 : i64, scratch_operands = 0 : i64, tpu.core_type = #tpu.core_type<tc>, window_params = [{pipeline_mode = #tpu.pipeline_mode<synchronous>, transform_indices = @transform_0, window_bounds = array<i64: 8, 128>}, {pipeline_mode = #tpu.pipeline_mode<synchronous>, transform_indices = @transform_1, window_bounds = array<i64: 128, 256>}, {pipeline_mode = #tpu.pipeline_mode<synchronous>, transform_indices = @transform_2, window_bounds = array<i64: 2, 256>}, {pipeline_mode = #tpu.pipeline_mode<synchronous>, transform_indices = @transform_3, window_bounds = array<i64: 8, 384>}]} {
    %c0 = arith.constant 0 : index
    %c0_0 = arith.constant 0 : index
    %0 = vector.load %arg1[%c0, %c0_0] : memref<8x128xf32, #tpu.memory_space<vmem>>, vector<8x128xf32>
    %c0_1 = arith.constant 0 : index
    %c0_2 = arith.constant 0 : index
    %1 = vector.load %arg2[%c0_1, %c0_2] : memref<128x256xf32, #tpu.memory_space<vmem>>, vector<128x256xf32>
    %cst = arith.constant dense<0.000000e+00> : vector<8x256xf32>
    %2 = tpu.matmul %0, %1, %cst {dimension_numbers = #tpu.dot_dimension_numbers<[1], [0], [0], [1], [0, 0, 1, 1], [], []>} : vector<8x128xf32>, vector<128x256xf32>, vector<8x256xf32> -> vector<8x256xf32>
    %cst_3 = arith.constant dense<0.000000e+00> : vector<256xf32>
    %3 = vector.multi_reduction <add>, %2, %cst_3 [0] : vector<8x256xf32> to vector<256xf32>
    %4 = vector.shape_cast %3 : vector<256xf32> to vector<1x256xf32>
    %cst_4 = arith.constant 1.250000e-01 : f32
    %5 = vector.broadcast %cst_4 : f32 to vector<1x256xf32>
    %6 = arith.mulf %4, %5 : vector<1x256xf32>
    %7 = vector.broadcast %6 : vector<1x256xf32> to vector<8x256xf32>
    %8 = arith.subf %2, %7 : vector<8x256xf32>
    %9 = arith.mulf %8, %8 : vector<8x256xf32>
    %cst_5 = arith.constant dense<0.000000e+00> : vector<256xf32>
    %10 = vector.multi_reduction <add>, %9, %cst_5 [0] : vector<8x256xf32> to vector<256xf32>
    %11 = vector.shape_cast %10 : vector<256xf32> to vector<1x256xf32>
    %cst_6 = arith.constant 1.250000e-01 : f32
    %12 = vector.broadcast %cst_6 : f32 to vector<1x256xf32>
    %13 = arith.mulf %11, %12 : vector<1x256xf32>
    %cst_7 = arith.constant 9.99999974E-6 : f32
    %14 = vector.broadcast %cst_7 : f32 to vector<1x256xf32>
    %15 = arith.addf %13, %14 : vector<1x256xf32>
    %16 = math.rsqrt %15 : vector<1x256xf32>
    %c0_8 = arith.constant 0 : index
    %c0_9 = arith.constant 0 : index
    %17 = vector.load %arg3[%c0_8, %c0_9] : memref<2x256xf32, #tpu.memory_space<vmem>>, vector<1x256xf32>
    %c1 = arith.constant 1 : index
    %c0_10 = arith.constant 0 : index
    %18 = vector.load %arg3[%c1, %c0_10] : memref<2x256xf32, #tpu.memory_space<vmem>>, vector<1x256xf32>
    %19 = vector.broadcast %16 : vector<1x256xf32> to vector<8x256xf32>
    %20 = arith.mulf %8, %19 : vector<8x256xf32>
    %21 = vector.broadcast %17 : vector<1x256xf32> to vector<8x256xf32>
    %22 = arith.mulf %21, %20 : vector<8x256xf32>
    %23 = vector.broadcast %18 : vector<1x256xf32> to vector<8x256xf32>
    %24 = arith.addf %22, %23 : vector<8x256xf32>
    %cst_11 = arith.constant 0.000000e+00 : f32
    %25 = vector.broadcast %cst_11 : f32 to vector<8x256xf32>
    %26 = arith.maximumf %24, %25 : vector<8x256xf32>
    %c0_12 = arith.constant 0 : index
    %c0_13 = arith.constant 0 : index
    %27 = vector.load %arg4[%c0_12, %c0_13] : memref<8x384xf32, #tpu.memory_space<vmem>>, vector<8x256xf32>
    tpu.vector_store %arg4[%c0_12, %c0_13], %26 {strides = array<i32>} : memref<8x384xf32, #tpu.memory_space<vmem>>, vector<8x256xf32>,
    %c0_14 = arith.constant 0 : index
    %c256 = arith.constant 256 : index
    %28 = vector.load %arg4[%c0_14, %c256] : memref<8x384xf32, #tpu.memory_space<vmem>>, vector<8x128xf32>
    tpu.vector_store %arg4[%c0_14, %c256], %0 {strides = array<i32>} : memref<8x384xf32, #tpu.memory_space<vmem>>, vector<8x128xf32>,
    return
  }
  func.func @transform_0(%arg0: i32) -> (i32, i32) {
    %c0_i32 = arith.constant 0 : i32
    %c0_i32_0 = arith.constant 0 : i32
    %c0_i32_1 = arith.constant 0 : i32
    return %c0_i32, %c0_i32_0 : i32, i32
  }
  func.func @transform_1(%arg0: i32) -> (i32, i32) {
    %c0_i32 = arith.constant 0 : i32
    %c0_i32_0 = arith.constant 0 : i32
    %c0_i32_1 = arith.constant 0 : i32
    return %c0_i32, %c0_i32_0 : i32, i32
  }
  func.func @transform_2(%arg0: i32) -> (i32, i32) {
    %c0_i32 = arith.constant 0 : i32
    %c0_i32_0 = arith.constant 0 : i32
    %c0_i32_1 = arith.constant 0 : i32
    return %c0_i32, %c0_i32_0 : i32, i32
  }
  func.func @transform_3(%arg0: i32) -> (i32, i32) {
    %c0_i32 = arith.constant 0 : i32
    %c0_i32_0 = arith.constant 0 : i32
    %c0_i32_1 = arith.constant 0 : i32
    return %c0_i32, %c0_i32_0 : i32, i32
  }
}

</mosaic_0001>

<llo_original>
// kernel: tpu_custom_call.1
$region0: #{tpu_custom_call.1}
  #allocation0 [shape = 'u32[]', space=smem, size = 0x4, offset = 0x4, fixed_abs, tag = 'smem constant byte address 0x4 - core index']
  #allocation1 [shape = 'u32[144,128]{1,0:T(1,128)}', space=vmem, size = 0x12000, scoped, tag = 'internal scratch']
  %s0 = inlined_call_operand.hbm [shape: f32[8,128], index: 0, kind: input, shape index: {}]
  %s1 = inlined_call_operand.hbm [shape: f32[128,256], index: 1, kind: input, shape index: {}]
  %s2 = inlined_call_operand.vmem [shape: f32[2,256], index: 2, kind: input, shape index: {}]
  %s3 = inlined_call_operand.hbm [shape: f32[8,384], index: 3, kind: output, shape index: {}]
  %s4 = sld [smem:[#allocation0]]
  $region30: #{tpu_custom_call.1} parent=0
    _
  %s6 = ssub.s32 1, %s4
  %s7 = scalar_select 0, %s6, %s4
  $region1: #{tpu_custom_call.1} parent=0
    #allocation2 [shape = 'u8[4096]{0}', space=vmem, size = 0x1000, scoped, tag = 'input window, operand 0, single buffered']
    #allocation3 [shape = 's32[1]{0}', space=sflag, size = 0x4, scoped, tag = 'scoped memory for tpu_custom_call.1']
    #allocation4 [shape = 's32[1]{0}', space=sflag, size = 0x4, scoped, tag = 'scoped memory for tpu_custom_call.1']
    #allocation5 [shape = 'u8[131072]{0}', space=vmem, size = 0x20000, scoped, tag = 'input window, operand 1, single buffered']
    #allocation6 [shape = 's32[1]{0}', space=sflag, size = 0x4, scoped, tag = 'scoped memory for tpu_custom_call.1']
    #allocation7 [shape = 'u8[12288]{0}', space=vmem, size = 0x3000, scoped, tag = 'output window, operand 0, single buffered']
    %8 = vsyncpa [#allocation3], 0
    %9 = vsyncpa [#allocation6], 0
    %10 = vsyncpa [#allocation4], 0
    // Predicated region
    $region2: #{tpu_custom_call.1} parent=1 // pred_check
      _
    $region3: #{tpu_custom_call.1} parent=1 // pred_check_branch
      %12 = sbr.rel (0) target = $region5
    $region4: #{tpu_custom_call.1} parent=1 // pred_region
      %s14 = ssub.s32 128, 128
      %15 = vsyncadd [#allocation3], %s14
      %s17 = sshll.u32 [#allocation2], 4
      %s18 = int_to_ptr.vmem [resolvable:$true] %s17
      %20 = dma.hbm_to_vmem [thread:$0]  %s0, 128, %s18, [#allocation3]
    $region5: #{tpu_custom_call.1} parent=1 // pred_fallthru
      _
    // Predicated region
    $region6: #{tpu_custom_call.1} parent=1 // pred_check
      _
    $region7: #{tpu_custom_call.1} parent=1 // pred_check_branch
      %22 = sbr.rel (0) target = $region9
    $region8: #{tpu_custom_call.1} parent=1 // pred_region
      %s24 = ssub.s32 4096, 4096
      %25 = vsyncadd [#allocation6], %s24
      %s26 = sshll.u32 [#allocation5], 4
      %s27 = int_to_ptr.vmem [resolvable:$true] %s26
      %32 = dma.hbm_to_vmem [thread:$0]  %s1, 4096, %s27, [#allocation6], 256, 256, 16
    $region9: #{tpu_custom_call.1} parent=1 // pred_fallthru
      _
    // Predicated region
    $region10: #{tpu_custom_call.1} parent=1 // pred_check
      _
    $region11: #{tpu_custom_call.1} parent=1 // pred_check_branch
      %34 = sbr.rel (0) target = $region13
    $region12: #{tpu_custom_call.1} parent=1 // pred_region
      _
    $region13: #{tpu_custom_call.1} parent=1 // pred_fallthru
      _
    // Predicated region
    $region14: #{tpu_custom_call.1} parent=1 // pred_check
      _
    $region15: #{tpu_custom_call.1} parent=1 // pred_check_branch
      %36 = sbr.rel (0) target = $region17
    $region16: #{tpu_custom_call.1} parent=1 // pred_region
      %37 = dma.done [#allocation3], 128
    $region17: #{tpu_custom_call.1} parent=1 // pred_fallthru
      _
    // Predicated region
    $region18: #{tpu_custom_call.1} parent=1 // pred_check
      _
    $region19: #{tpu_custom_call.1} parent=1 // pred_check_branch
      %39 = sbr.rel (0) target = $region21
    $region20: #{tpu_custom_call.1} parent=1 // pred_region
      %40 = dma.done [#allocation6], 4096
    $region21: #{tpu_custom_call.1} parent=1 // pred_fallthru
      _
    %v41 = vld [vmem:[#allocation2] sm:$0xff]
    %v42 = vld [vmem:[#allocation5] sm:$0xff]
    %v43 = vld [vmem:[#allocation5 + $0x8] sm:$0xff]
    %v44 = vld [vmem:[#allocation5 + $0x10] sm:$0xff]
    %v45 = vld [vmem:[#allocation5 + $0x18] sm:$0xff]
    %v46 = vld [vmem:[#allocation5 + $0x20] sm:$0xff]
    %v47 = vld [vmem:[#allocation5 + $0x28] sm:$0xff]
    %v48 = vld [vmem:[#allocation5 + $0x30] sm:$0xff]
    %v49 = vld [vmem:[#allocation5 + $0x38] sm:$0xff]
    %v50 = vld [vmem:[#allocation5 + $0x40] sm:$0xff]
    %v51 = vld [vmem:[#allocation5 + $0x48] sm:$0xff]
    %v52 = vld [vmem:[#allocation5 + $0x50] sm:$0xff]
    %v53 = vld [vmem:[#allocation5 + $0x58] sm:$0xff]
    %v54 = vld [vmem:[#allocation5 + $0x60] sm:$0xff]
    %v55 = vld [vmem:[#allocation5 + $0x68] sm:$0xff]
    %v56 = vld [vmem:[#allocation5 + $0x70] sm:$0xff]
    %v57 = vld [vmem:[#allocation5 + $0x78] sm:$0xff]
    %v58 = vld [vmem:[#allocation5 + $0x80] sm:$0xff]
    %v59 = vld [vmem:[#allocation5 + $0x88] sm:$0xff]
    %v60 = vld [vmem:[#allocation5 + $0x90] sm:$0xff]
    %v61 = vld [vmem:[#allocation5 + $0x98] sm:$0xff]
    %v62 = vld [vmem:[#allocation5 + $0xa0] sm:$0xff]
    %v63 = vld [vmem:[#allocation5 + $0xa8] sm:$0xff]
    %v64 = vld [vmem:[#allocation5 + $0xb0] sm:$0xff]
    %v65 = vld [vmem:[#allocation5 + $0xb8] sm:$0xff]
    %v66 = vld [vmem:[#allocation5 + $0xc0] sm:$0xff]
    %v67 = vld [vmem:[#allocation5 + $0xc8] sm:$0xff]
    %v68 = vld [vmem:[#allocation5 + $0xd0] sm:$0xff]
    %v69 = vld [vmem:[#allocation5 + $0xd8] sm:$0xff]
    %v70 = vld [vmem:[#allocation5 + $0xe0] sm:$0xff]
    %v71 = vld [vmem:[#allocation5 + $0xe8] sm:$0xff]
    %v72 = vld [vmem:[#allocation5 + $0xf0] sm:$0xff]
    %v73 = vld [vmem:[#allocation5 + $0xf8] sm:$0xff]
    %74 = vmatprep.subr.mxu0 %v43
    %75 = vmatpush1.msra.mxu0 %v42
    %76 = vmatprep.subr.mxu0 %v45
    %77 = vmatpush1.msra.mxu0 %v44
    %78 = vmatprep.subr.mxu0 %v47
    %79 = vmatpush1.msra.mxu0 %v46
    %80 = vmatprep.subr.mxu0 %v49
    %81 = vmatpush1.msra.mxu0 %v48
    %82 = vmatprep.subr.mxu0 %v51
    %83 = vmatpush1.msra.mxu0 %v50
    %84 = vmatprep.subr.mxu0 %v53
    %85 = vmatpush1.msra.mxu0 %v52
    %86 = vmatprep.subr.mxu0 %v55
    %87 = vmatpush1.msra.mxu0 %v54
    %88 = vmatprep.subr.mxu0 %v57
    %89 = vmatpush1.msra.mxu0 %v56
    %90 = vmatprep.subr.mxu0 %v59
    %91 = vmatpush1.msra.mxu0 %v58
    %92 = vmatprep.subr.mxu0 %v61
    %93 = vmatpush1.msra.mxu0 %v60
    %94 = vmatprep.subr.mxu0 %v63
    %95 = vmatpush1.msra.mxu0 %v62
    %96 = vmatprep.subr.mxu0 %v65
    %97 = vmatpush1.msra.mxu0 %v64
    %98 = vmatprep.subr.mxu0 %v67
    %99 = vmatpush1.msra.mxu0 %v66
    %100 = vmatprep.subr.mxu0 %v69
    %101 = vmatpush1.msra.mxu0 %v68
    %102 = vmatprep.subr.mxu0 %v71
    %103 = vmatpush1.msra.mxu0 %v70
    %104 = vmatprep.subr.mxu0 %v73
    %105 = vmatpush1.msra.mxu0 %v72
    %106 = vmatprep.subr.mxu0 0.0
    %107 = vmatpush1.msra.mxu0 0.0
    %108 = vmatprep.subr.mxu0 0.0
    %109 = vmatpush1.msra.mxu0 0.0
    %110 = vmatprep.subr.mxu0 0.0
    %111 = vmatpush1.msra.mxu0 0.0
    %112 = vmatprep.subr.mxu0 0.0
    %113 = vmatpush1.msra.mxu0 0.0
    %114 = vmatprep.subr.mxu0 0.0
    %115 = vmatpush1.msra.mxu0 0.0
    %116 = vmatprep.subr.mxu0 0.0
    %117 = vmatpush1.msra.mxu0 0.0
    %118 = vmatprep.subr.mxu0 0.0
    %119 = vmatpush1.msra.mxu0 0.0
    %120 = vmatprep.subr.mxu0 0.0
    %121 = vmatpush1.msra.mxu0 0.0
    %122 = vmatprep.subr.mxu0 0.0
    %123 = vmatpush1.msra.mxu0 0.0
    %124 = vmatprep.subr.mxu0 0.0
    %125 = vmatpush1.msra.mxu0 0.0
    %126 = vmatprep.subr.mxu0 0.0
    %127 = vmatpush1.msra.mxu0 0.0
    %128 = vmatprep.subr.mxu0 0.0
    %129 = vmatpush1.msra.mxu0 0.0
    %130 = vmatprep.subr.mxu0 0.0
    %131 = vmatpush1.msra.mxu0 0.0
    %132 = vmatprep.subr.mxu0 0.0
    %133 = vmatpush1.msra.mxu0 0.0
    %134 = vmatprep.subr.mxu0 0.0
    %135 = vmatpush1.msra.mxu0 0.0
    %136 = vmatprep.subr.mxu0 0.0
    %137 = vmatpush1.msra.mxu0 0.0
    %138 = vmatprep.mubr.f32.mxu0 0.0
    %139 = vmatmul.mubr.f32.gmra.mrb[0].mxu0 %v41
    %v140 = vpop.f32.mrb[0].mxu0
    %v141 = vadd.f32 0.0, %v140
    %v142 = vpop.f32.mrb[0].mxu0
    %v143 = vadd.f32 0.0, %v142
    %144 = vdwg.mxu0
    %v145 = vrot.slane %v141, 4
    %v146 = vadd.f32 %v141, %v145
    %v147 = vrot.slane %v146, 2
    %v148 = vadd.f32 %v146, %v147
    %v149 = vrot.slane %v148, 1
    %v150 = vadd.f32 %v148, %v149
    %v151 = vrot.slane %v143, 4
    %v152 = vadd.f32 %v143, %v151
    %v153 = vrot.slane %v152, 2
    %v154 = vadd.f32 %v152, %v153
    %v155 = vrot.slane %v154, 1
    %v156 = vadd.f32 %v154, %v155
    %v157 = vmul.f32 %v150, 0.125
    %v158 = vmul.f32 %v156, 0.125
    %v159 = vsub.f32 %v141, %v157
    %v160 = vsub.f32 %v143, %v158
    %v161 = vmul.f32 %v159, %v159
    %v162 = vmul.f32 %v160, %v160
    %v163 = vrot.slane %v161, 4
    %v164 = vadd.f32 %v161, %v163
    %v165 = vrot.slane %v164, 2
    %v166 = vadd.f32 %v164, %v165
    %v167 = vrot.slane %v166, 1
    %v168 = vadd.f32 %v166, %v167
    %v169 = vrot.slane %v162, 4
    %v170 = vadd.f32 %v162, %v169
    %v171 = vrot.slane %v170, 2
    %v172 = vadd.f32 %v170, %v171
    %v173 = vrot.slane %v172, 1
    %v174 = vadd.f32 %v172, %v173
    %v175 = vmul.f32 %v168, 0.125
    %v176 = vmul.f32 %v174, 0.125
    %v177 = vadd.f32 %v175, 1e-05
    %v178 = vadd.f32 %v176, 1e-05
    %v179 = vrsqrt.pop %v177
    %v180 = vrsqrt.pop %v178
    %v181 = vld [vmem:[%s2] ss:$2 sm:$0x3]
    %s182 = scalar_lea.vmem %s2, 1
    %v183 = vld [vmem:[%s182] ss:$2 sm:$0x3]
    %v184 = vmul.f32 %v159, %v179
    %v185 = vmul.f32 %v160, %v180
    %v187 = vlaneseq
    %v188 = vshrl.u32 %v187, 7
    %v189 = vsub.s32 0, %v188
    %v190 = vrot.slane %v181, %v189
    %v191 = vlaneseq
    %v192 = vshrl.u32 %v191, 7
    %v193 = vsub.s32 1, %v192
    %v194 = vrot.slane %v181, %v193
    %v197 = vmul.f32 %v190, %v184
    %v198 = vmul.f32 %v194, %v185
    %v200 = vlaneseq
    %v201 = vshrl.u32 %v200, 7
    %v202 = vsub.s32 0, %v201
    %v203 = vrot.slane %v183, %v202
    %v204 = vlaneseq
    %v205 = vshrl.u32 %v204, 7
    %v206 = vsub.s32 1, %v205
    %v207 = vrot.slane %v183, %v206
    %v210 = vadd.f32 %v197, %v203
    %v211 = vadd.f32 %v198, %v207
    %v212 = vmax.f32 %v210, 0.0
    %v213 = vmax.f32 %v211, 0.0
    %214 = vst [vmem:[#allocation7] sm:$0xff] %v212
    %215 = vst [vmem:[#allocation7 + $0x8] sm:$0xff] %v213
    %216 = vst [vmem:[#allocation7 + $0x10] sm:$0xff] %v41
    // Predicated region
    $region22: #{tpu_custom_call.1} parent=1 // pred_check
      _
    $region23: #{tpu_custom_call.1} parent=1 // pred_check_branch
      %218 = sbr.rel (0) target = $region25
    $region24: #{tpu_custom_call.1} parent=1 // pred_region
      %s220 = ssub.s32 384, 384
      %221 = vsyncadd [#allocation4], %s220
      %s223 = sshll.u32 [#allocation7], 4
      %s224 = int_to_ptr.vmem [resolvable:$true] %s223
      %226 = dma.vmem_to_hbm [thread:$0]  %s224, 384, %s3, [#allocation4]
    $region25: #{tpu_custom_call.1} parent=1 // pred_fallthru
      _
    // Predicated region
    $region26: #{tpu_custom_call.1} parent=1 // pred_check
      _
    $region27: #{tpu_custom_call.1} parent=1 // pred_check_branch
      %228 = sbr.rel (0) target = $region29
    $region28: #{tpu_custom_call.1} parent=1 // pred_region
      %229 = dma.done [#allocation4], 384
    $region29: #{tpu_custom_call.1} parent=1 // pred_fallthru
      _
    %230 = vsyncpa [#allocation3], 1
    %231 = vsyncpa [#allocation6], 1
    %232 = vsyncpa [#allocation4], 1

</llo_original>
